<compile_context>
chip_gen: v7x
topology: tpu7x:2x2x1
jax: 0.10.0
libtpu: 0.0.40
codegen_flags: <defaults>
</compile_context>

<pallas_src>
import math

import jax
import jax.numpy as jnp
import numpy as np
from jax.experimental import pallas as pl
from jax.experimental.pallas import tpu as pltpu

SIGMA_DATA = 0.5  # EDM preconditioning constant of the synthetic denoiser

# columns of the flat per-step coefficient table (f32, SMEM scalar prefetch)
(_NOISE_COEF, _INV_SIG_HAT, _DT, _CSKIP_HAT, _COUT_HAT,
 _CSKIP_NXT, _COUT_NXT, _INV_SIG_NXT) = range(8)
_NCOEF = 8


def _round_up(x, m):
    return (x + m - 1) // m * m


# ----------------------------------------------------------------------------
# shared math
# ----------------------------------------------------------------------------
def _edm_precond(sigma):
    c_skip = SIGMA_DATA ** 2 / (sigma ** 2 + SIGMA_DATA ** 2)
    c_out = sigma * SIGMA_DATA / jnp.sqrt(sigma ** 2 + SIGMA_DATA ** 2)
    return c_skip, c_out


def _mix_ref(w, x):
    """Reference 1x1 channel mix: w @ x via broadcast-FMAs, w (C,C), x (C,T)."""
    mix = w[:, 0:1] * x[0:1, :]
    for c in range(1, x.shape[0]):
        mix = mix + w[:, c:c + 1] * x[c:c + 1, :]
    return mix


def _precompute_coefs(sigmas_full, *, s_tmin, s_tmax, s_churn, s_noise,
                      num_steps, use_heun):
    """Flat (num_steps*_NCOEF,) f32 table + (num_steps,) int32 Heun flags."""
    sig = sigmas_full[:-1].astype(jnp.float32)
    sig_next = sigmas_full[1:].astype(jnp.float32)
    gamma_val = min(s_churn / num_steps, math.sqrt(2.0) - 1.0)
    gammas = jnp.where((sig >= s_tmin) & (sig <= s_tmax), gamma_val, 0.0)
    sigma_hat = sig * (1.0 + gammas)
    noise_coef = s_noise * jnp.sqrt(jnp.maximum(sigma_hat ** 2 - sig ** 2, 0.0))
    inv_sig_hat = 1.0 / sigma_hat
    dt = sig_next - sigma_hat
    inv_sig_nxt = jnp.where(sig_next != 0.0,
                            1.0 / jnp.where(sig_next != 0.0, sig_next, 1.0),
                            0.0)
    cs_hat, co_hat = _edm_precond(sigma_hat)
    cs_nxt, co_nxt = _edm_precond(sig_next)
    coef = jnp.stack([noise_coef, inv_sig_hat, dt, cs_hat, co_hat,
                      cs_nxt, co_nxt, inv_sig_nxt], axis=1)
    heun = (jnp.where(sig_next != 0.0, 1, 0)
            * (1 if use_heun else 0)).astype(jnp.int32)
    return coef.reshape(-1).astype(jnp.float32), heun


# ----------------------------------------------------------------------------
# Pallas kernel: whole sampler loop; one lane tile per "parallel" grid index
# ----------------------------------------------------------------------------
def _edm_sampler_kernel(coef_ref, heun_ref, eps_ref, w_ref, x0_ref, x_ref):
    s = pl.program_id(1)                     # step index (innermost, "arbitrary")

    # step 0: seed the VMEM-resident state with x0 = sigma_0 * noise
    @pl.when(s == 0)
    def _init():
        x_ref[...] = x0_ref[...]

    base = s * _NCOEF
    noise_coef = coef_ref[base + _NOISE_COEF]
    inv_sig_hat = coef_ref[base + _INV_SIG_HAT]
    dt = coef_ref[base + _DT]
    cskip_hat = coef_ref[base + _CSKIP_HAT]
    cout_hat = coef_ref[base + _COUT_HAT]
    do_heun = heun_ref[s]

    # hoist block-weight column slices once; shared by both denoiser evals
    wv = w_ref[...]
    w_cols = [wv[:, r:r + 1] for r in range(wv.shape[1])]

    def channel_mix(x):
        # implicit (R,1)*(1,T) broadcasting -> no full-tile broadcast temps
        mix = w_cols[0] * x[0:1, :]
        for r in range(1, len(w_cols)):
            mix = mix + w_cols[r] * x[r:r + 1, :]
        return mix

    x = x_ref[...]
    eps = eps_ref[...].astype(jnp.float32)   # bf16 stream -> f32 in VMEM

    # stochastic churn: x_hat = x + s_noise*sqrt(sigma_hat^2 - sigma^2)*eps
    # (noise_coef == 0 when gamma == 0, matching the PyTorch branch)
    x_hat = x + noise_coef * eps

    # Euler (predictor) step with the synthetic EDM-preconditioned denoiser
    den_cur = cskip_hat * x_hat + cout_hat * jnp.tanh(channel_mix(x_hat))
    d = (x_hat - den_cur) * inv_sig_hat
    x_eul = x_hat + dt * d

    @pl.when(do_heun == 1)      # Heun 2nd-order correction (sigma_next != 0)
    def _heun():
        den_nxt = (coef_ref[base + _CSKIP_NXT] * x_eul
                   + coef_ref[base + _COUT_NXT] * jnp.tanh(channel_mix(x_eul)))
        d_prime = (x_eul - den_nxt) * coef_ref[base + _INV_SIG_NXT]
        x_ref[...] = x_hat + 0.5 * dt * (d + d_prime)

    @pl.when(do_heun == 0)      # plain Euler on the final step (sigma_next == 0)
    def _euler():
        x_ref[...] = x_eul


def edm_sample_pallas(noise, sigmas, eps, w, *, num_steps,
                      s_tmin=0.0, s_tmax=float("inf"),
                      s_churn=150.0, s_noise=1.04, use_heun=True,
                      lane_tile=None):
    B, C, H, W = noise.shape
    N = H * W
    BN = B * N

    # sublane packing: stack P lane-chunks along the channel (sublane) axis so
    # the state fills all 8 sublanes of every f32 vreg (C=4 alone fills half)
    P = 8 // C if (C <= 8 and 8 % C == 0) else 1
    ROWS = P * C

    sigmas = sigmas.astype(jnp.float32)
    sigmas_full = jnp.concatenate([sigmas, jnp.zeros((1,), jnp.float32)])
    coef, heun = _precompute_coefs(sigmas_full, s_tmin=s_tmin, s_tmax=s_tmax,
                                   s_churn=s_churn, s_noise=s_noise,
                                   num_steps=num_steps, use_heun=use_heun)

    # ---- tile sizing: big lane tiles, 128-aligned, even tile count (v7x) ----
    bn_packed = -(-BN // P)                        # packed lanes before padding
    if lane_tile is None:
        per_lane_bytes = 14 * ROWS * 4             # x + x0 + eps bufs + ~8 f32 temps
        budget_bytes = 16 << 20                    # fits v7x 32 MiB default scoped VMEM
        lane_tile = min(_round_up(bn_packed, 128),
                        max(128, (budget_bytes // per_lane_bytes) // 128 * 128))
    lane_tile = max(128, _round_up(lane_tile, 128))
    num_tiles = -(-bn_packed // lane_tile)
    if num_tiles > 1 and num_tiles % 2 == 1:
        # v7x megacore: prefer an even "parallel" tile count (2 TensorCores)
        lane_tile = max(128, _round_up(-(-bn_packed // (num_tiles + 1)), 128))
        num_tiles = -(-bn_packed // lane_tile)
    bn_pad = num_tiles * lane_tile                 # packed lane dim (mult. of 128)
    assert lane_tile % 128 == 0 and bn_pad % lane_tile == 0
    pad = P * bn_pad - BN                          # zero pad on original lane dim

    # ---- lane-dense, sublane-packed layouts (one transpose in, one out) ----
    noise_cm = (noise.astype(jnp.float32).reshape(B, C, N)
                .transpose(1, 0, 2).reshape(C, BN))
    x0_pk = (jnp.pad(sigmas_full[0] * noise_cm, ((0, 0), (0, pad)))
             .reshape(C, P, bn_pad).reshape(ROWS, bn_pad))

    eps_cm = (eps.reshape(num_steps, B, C, N)
              .transpose(0, 2, 1, 3).reshape(num_steps, C, BN))
    eps_pk = (jnp.pad(eps_cm, ((0, 0), (0, 0), (0, pad)))
              .reshape(num_steps, C, P, bn_pad)
              .reshape(num_steps, ROWS, bn_pad)
              .astype(jnp.bfloat16))               # halves the per-step HBM stream

    # block-diagonal weight equivalent to the per-channel mix on packed rows
    w_exp = jnp.kron(w.astype(jnp.float32), jnp.eye(P, dtype=jnp.float32))

    grid_spec = pltpu.PrefetchScalarGridSpec(
        num_scalar_prefetch=2,                      # flat coef table + heun flags
        grid=(num_tiles, num_steps),                # steps MUST stay innermost
        in_specs=[
            pl.BlockSpec((None, ROWS, lane_tile), lambda i, s, c, h: (s, 0, i)),  # eps
            pl.BlockSpec((ROWS, ROWS), lambda i, s, c, h: (0, 0)),                # w
            pl.BlockSpec((ROWS, lane_tile), lambda i, s, c, h: (0, i)),           # x0
        ],
        out_specs=pl.BlockSpec((ROWS, lane_tile), lambda i, s, c, h: (0, i)),     # x
    )

    x_pk = pl.pallas_call(
        _edm_sampler_kernel,
        out_shape=jax.ShapeDtypeStruct((ROWS, bn_pad), jnp.float32),
        grid_spec=grid_spec,
        compiler_params=pltpu.CompilerParams(
            dimension_semantics=("parallel", "arbitrary")),
    )(coef, heun, eps_pk, w_exp, x0_pk)

    x_cm = x_pk.reshape(C, P, bn_pad).reshape(C, P * bn_pad)[:, :BN]
    return x_cm.reshape(C, B, N).transpose(1, 0, 2).reshape(B, C, H, W)


# ----------------------------------------------------------------------------
# pure-JAX reference (direct transcription of the PyTorch forward)
# ----------------------------------------------------------------------------
def edm_sample_ref(noise, sigmas, eps, w, *, num_steps,
                   s_tmin=0.0, s_tmax=float("inf"),
                   s_churn=150.0, s_noise=1.04, use_heun=True):
    B, C, H, W = noise.shape
    N = H * W
    BN = B * N
    sigmas = sigmas.astype(jnp.float32)
    sigmas_full = jnp.concatenate([sigmas, jnp.zeros((1,), jnp.float32)])
    gamma_val = min(s_churn / num_steps, math.sqrt(2.0) - 1.0)

    def denoise(x, sigma):
        c_skip, c_out = _edm_precond(sigma)
        return c_skip * x + c_out * jnp.tanh(_mix_ref(w, x))

    x = sigmas_full[0] * (noise.astype(jnp.float32).reshape(B, C, N)
                          .transpose(1, 0, 2).reshape(C, BN))
    eps_cm = (eps.astype(jnp.float32).reshape(num_steps, B, C, N)
              .transpose(0, 2, 1, 3).reshape(num_steps, C, BN))

    for i in range(num_steps):
        sigma, sigma_next = sigmas_full[i], sigmas_full[i + 1]
        gamma = jnp.where((sigma >= s_tmin) & (sigma <= s_tmax), gamma_val, 0.0)
        sigma_hat = sigma * (1.0 + gamma)
        x_hat = x + s_noise * jnp.sqrt(
            jnp.maximum(sigma_hat ** 2 - sigma ** 2, 0.0)) * eps_cm[i]
        d = (x_hat - denoise(x_hat, sigma_hat)) / sigma_hat
        x_next = x_hat + (sigma_next - sigma_hat) * d
        if use_heun and i < num_steps - 1:          # sigma_next != 0
            d_prime = (x_next - denoise(x_next, sigma_next)) / sigma_next
            x_next = x_hat + 0.5 * (sigma_next - sigma_hat) * (d + d_prime)
        x = x_next
    return x.reshape(C, B, N).transpose(1, 0, 2).reshape(B, C, H, W)


# ----------------------------------------------------------------------------
if __name__ == "__main__":
    B, C, H, W = 2, 4, 16, 16
    num_steps = 8
    s_tmin, s_tmax = 0.0, float("inf")
    s_churn, s_noise = 150.0, 1.04
    use_heun = True

    key = jax.random.PRNGKey(0)
    k_noise, k_eps, k_w = jax.random.split(key, 3)
    noise = jax.random.normal(k_noise, (B, C, H, W), dtype=jnp.float32)
    # per-step churn noise, shared by both paths; stored bf16 to halve the
    # per-step HBM stream (both paths consume the same bf16 values)
    eps = jax.random.normal(k_eps, (num_steps, B, C, H, W),
                            dtype=jnp.float32).astype(jnp.bfloat16)
    # EDM-style geometric sigma schedule (sigma_max -> sigma_min); 0 appended inside.
    sigmas = jnp.exp(jnp.linspace(jnp.log(10.0), jnp.log(0.05),
                                  num_steps)).astype(jnp.float32)
    # deterministic synthetic 1x1 channel-mix denoiser weight
    w = (0.8 * jnp.eye(C) + 0.05 * jax.random.normal(k_w, (C, C))).astype(jnp.float32)

    out_pallas = edm_sample_pallas(noise, sigmas, eps, w, num_steps=num_steps,
                                   s_tmin=s_tmin, s_tmax=s_tmax,
                                   s_churn=s_churn, s_noise=s_noise,
                                   use_heun=use_heun)
    jax.block_until_ready(out_pallas)

    out_ref = edm_sample_ref(noise, sigmas, eps, w, num_steps=num_steps,
                             s_tmin=s_tmin, s_tmax=s_tmax,
                             s_churn=s_churn, s_noise=s_noise,
                             use_heun=use_heun)
    jax.block_until_ready(out_ref)

    assert out_pallas.shape == (B, C, H, W)
    np.testing.assert_allclose(np.asarray(out_pallas), np.asarray(out_ref),
                               atol=1e-3, rtol=1e-3)
    print("KERNEL_OK")
</pallas_src>

<mosaic_0001>
module attributes {stable_mosaic.version = 11 : i64} {
  func.func @_edm_sampler_kernel(%arg0: i32, %arg1: i32, %arg2: memref<64xf32, #tpu.memory_space<smem>>, %arg3: memref<8xi32, #tpu.memory_space<smem>>, %arg4: memref<1x8x256xbf16, #tpu.memory_space<vmem>>, %arg5: memref<8x8xf32, #tpu.memory_space<vmem>>, %arg6: memref<8x256xf32, #tpu.memory_space<vmem>>, %arg7: memref<8x256xf32, #tpu.memory_space<vmem>>) attributes {dimension_semantics = [#tpu.dimension_semantics<parallel>, #tpu.dimension_semantics<arbitrary>], iteration_bounds = array<i64: 1, 8>, scalar_prefetch = 2 : i64, scratch_operands = 0 : i64, tpu.core_type = #tpu.core_type<tc>, window_params = [{transform_indices = @transform_0, window_bounds = array<i64: 1, 8, 256>}, {pipeline_mode = #tpu.pipeline_mode<synchronous>, transform_indices = @transform_1, window_bounds = array<i64: 8, 8>}, {transform_indices = @transform_2, window_bounds = array<i64: 8, 256>}, {transform_indices = @transform_3, window_bounds = array<i64: 8, 256>}]} {
    %c0_i32 = arith.constant 0 : i32
    %0 = arith.cmpi eq, %arg1, %c0_i32 : i32
    %1 = arith.extui %0 : i1 to i32
    %c0_i32_0 = arith.constant 0 : i32
    %2 = arith.cmpi ne, %1, %c0_i32_0 : i32
    scf.if %2 {
      %c0_12 = arith.constant 0 : index
      %c0_13 = arith.constant 0 : index
      %94 = vector.load %arg6[%c0_12, %c0_13] : memref<8x256xf32, #tpu.memory_space<vmem>>, vector<8x256xf32>
      %c0_14 = arith.constant 0 : index
      %c0_15 = arith.constant 0 : index
      %95 = vector.load %arg7[%c0_14, %c0_15] : memref<8x256xf32, #tpu.memory_space<vmem>>, vector<8x256xf32>
      tpu.vector_store %arg7[%c0_14, %c0_15], %94 {strides = array<i32>} : memref<8x256xf32, #tpu.memory_space<vmem>>, vector<8x256xf32>,
    } else {
    }
    %c8_i32 = arith.constant 8 : i32
    %3 = arith.muli %arg1, %c8_i32 : i32
    %c0_i32_1 = arith.constant 0 : i32
    %4 = arith.addi %3, %c0_i32_1 : i32
    %5 = arith.index_cast %4 : i32 to index
    %6 = memref.load %arg2[%5] : memref<64xf32, #tpu.memory_space<smem>>
    %c1_i32 = arith.constant 1 : i32
    %7 = arith.addi %3, %c1_i32 : i32
    %8 = arith.index_cast %7 : i32 to index
    %9 = memref.load %arg2[%8] : memref<64xf32, #tpu.memory_space<smem>>
    %c2_i32 = arith.constant 2 : i32
    %10 = arith.addi %3, %c2_i32 : i32
    %11 = arith.index_cast %10 : i32 to index
    %12 = memref.load %arg2[%11] : memref<64xf32, #tpu.memory_space<smem>>
    %c3_i32 = arith.constant 3 : i32
    %13 = arith.addi %3, %c3_i32 : i32
    %14 = arith.index_cast %13 : i32 to index
    %15 = memref.load %arg2[%14] : memref<64xf32, #tpu.memory_space<smem>>
    %c4_i32 = arith.constant 4 : i32
    %16 = arith.addi %3, %c4_i32 : i32
    %17 = arith.index_cast %16 : i32 to index
    %18 = memref.load %arg2[%17] : memref<64xf32, #tpu.memory_space<smem>>
    %19 = arith.index_cast %arg1 : i32 to index
    %20 = memref.load %arg3[%19] : memref<8xi32, #tpu.memory_space<smem>>
    %c0 = arith.constant 0 : index
    %c0_2 = arith.constant 0 : index
    %21 = vector.load %arg5[%c0, %c0_2] : memref<8x8xf32, #tpu.memory_space<vmem>>, vector<8x8xf32>
    %22 = vector.extract_strided_slice %21 {offsets = [0, 0], sizes = [8, 1], strides = [1, 1]} : vector<8x8xf32> to vector<8x1xf32>
    %23 = vector.extract_strided_slice %21 {offsets = [0, 1], sizes = [8, 1], strides = [1, 1]} : vector<8x8xf32> to vector<8x1xf32>
    %24 = vector.extract_strided_slice %21 {offsets = [0, 2], sizes = [8, 1], strides = [1, 1]} : vector<8x8xf32> to vector<8x1xf32>
    %25 = vector.extract_strided_slice %21 {offsets = [0, 3], sizes = [8, 1], strides = [1, 1]} : vector<8x8xf32> to vector<8x1xf32>
    %26 = vector.extract_strided_slice %21 {offsets = [0, 4], sizes = [8, 1], strides = [1, 1]} : vector<8x8xf32> to vector<8x1xf32>
    %27 = vector.extract_strided_slice %21 {offsets = [0, 5], sizes = [8, 1], strides = [1, 1]} : vector<8x8xf32> to vector<8x1xf32>
    %28 = vector.extract_strided_slice %21 {offsets = [0, 6], sizes = [8, 1], strides = [1, 1]} : vector<8x8xf32> to vector<8x1xf32>
    %29 = vector.extract_strided_slice %21 {offsets = [0, 7], sizes = [8, 1], strides = [1, 1]} : vector<8x8xf32> to vector<8x1xf32>
    %c0_3 = arith.constant 0 : index
    %c0_4 = arith.constant 0 : index
    %30 = vector.load %arg7[%c0_3, %c0_4] : memref<8x256xf32, #tpu.memory_space<vmem>>, vector<8x256xf32>
    %c0_5 = arith.constant 0 : index
    %c0_6 = arith.constant 0 : index
    %c0_7 = arith.constant 0 : index
    %31 = vector.load %arg4[%c0_5, %c0_6, %c0_7] : memref<1x8x256xbf16, #tpu.memory_space<vmem>>, vector<1x8x256xbf16>
    %32 = vector.shape_cast %31 : vector<1x8x256xbf16> to vector<8x256xbf16>
    %33 = arith.extf %32 : vector<8x256xbf16> to vector<8x256xf32>
    %34 = vector.broadcast %6 : f32 to vector<8x256xf32>
    %35 = arith.mulf %34, %33 : vector<8x256xf32>
    %36 = arith.addf %30, %35 : vector<8x256xf32>
    %37 = vector.broadcast %15 : f32 to vector<8x256xf32>
    %38 = arith.mulf %37, %36 : vector<8x256xf32>
    %39 = vector.extract_strided_slice %36 {offsets = [0, 0], sizes = [1, 256], strides = [1, 1]} : vector<8x256xf32> to vector<1x256xf32>
    %40 = vector.broadcast %22 : vector<8x1xf32> to vector<8x256xf32>
    %41 = vector.broadcast %39 : vector<1x256xf32> to vector<8x256xf32>
    %42 = arith.mulf %40, %41 : vector<8x256xf32>
    %43 = vector.extract_strided_slice %36 {offsets = [1, 0], sizes = [1, 256], strides = [1, 1]} : vector<8x256xf32> to vector<1x256xf32>
    %44 = vector.broadcast %23 : vector<8x1xf32> to vector<8x256xf32>
    %45 = vector.broadcast %43 : vector<1x256xf32> to vector<8x256xf32>
    %46 = arith.mulf %44, %45 : vector<8x256xf32>
    %47 = arith.addf %42, %46 : vector<8x256xf32>
    %48 = vector.extract_strided_slice %36 {offsets = [2, 0], sizes = [1, 256], strides = [1, 1]} : vector<8x256xf32> to vector<1x256xf32>
    %49 = vector.broadcast %24 : vector<8x1xf32> to vector<8x256xf32>
    %50 = vector.broadcast %48 : vector<1x256xf32> to vector<8x256xf32>
    %51 = arith.mulf %49, %50 : vector<8x256xf32>
    %52 = arith.addf %47, %51 : vector<8x256xf32>
    %53 = vector.extract_strided_slice %36 {offsets = [3, 0], sizes = [1, 256], strides = [1, 1]} : vector<8x256xf32> to vector<1x256xf32>
    %54 = vector.broadcast %25 : vector<8x1xf32> to vector<8x256xf32>
    %55 = vector.broadcast %53 : vector<1x256xf32> to vector<8x256xf32>
    %56 = arith.mulf %54, %55 : vector<8x256xf32>
    %57 = arith.addf %52, %56 : vector<8x256xf32>
    %58 = vector.extract_strided_slice %36 {offsets = [4, 0], sizes = [1, 256], strides = [1, 1]} : vector<8x256xf32> to vector<1x256xf32>
    %59 = vector.broadcast %26 : vector<8x1xf32> to vector<8x256xf32>
    %60 = vector.broadcast %58 : vector<1x256xf32> to vector<8x256xf32>
    %61 = arith.mulf %59, %60 : vector<8x256xf32>
    %62 = arith.addf %57, %61 : vector<8x256xf32>
    %63 = vector.extract_strided_slice %36 {offsets = [5, 0], sizes = [1, 256], strides = [1, 1]} : vector<8x256xf32> to vector<1x256xf32>
    %64 = vector.broadcast %27 : vector<8x1xf32> to vector<8x256xf32>
    %65 = vector.broadcast %63 : vector<1x256xf32> to vector<8x256xf32>
    %66 = arith.mulf %64, %65 : vector<8x256xf32>
    %67 = arith.addf %62, %66 : vector<8x256xf32>
    %68 = vector.extract_strided_slice %36 {offsets = [6, 0], sizes = [1, 256], strides = [1, 1]} : vector<8x256xf32> to vector<1x256xf32>
    %69 = vector.broadcast %28 : vector<8x1xf32> to vector<8x256xf32>
    %70 = vector.broadcast %68 : vector<1x256xf32> to vector<8x256xf32>
    %71 = arith.mulf %69, %70 : vector<8x256xf32>
    %72 = arith.addf %67, %71 : vector<8x256xf32>
    %73 = vector.extract_strided_slice %36 {offsets = [7, 0], sizes = [1, 256], strides = [1, 1]} : vector<8x256xf32> to vector<1x256xf32>
    %74 = vector.broadcast %29 : vector<8x1xf32> to vector<8x256xf32>
    %75 = vector.broadcast %73 : vector<1x256xf32> to vector<8x256xf32>
    %76 = arith.mulf %74, %75 : vector<8x256xf32>
    %77 = arith.addf %72, %76 : vector<8x256xf32>
    %78 = math.tanh %77 : vector<8x256xf32>
    %79 = vector.broadcast %18 : f32 to vector<8x256xf32>
    %80 = arith.mulf %79, %78 : vector<8x256xf32>
    %81 = arith.addf %38, %80 : vector<8x256xf32>
    %82 = arith.subf %36, %81 : vector<8x256xf32>
    %83 = vector.broadcast %9 : f32 to vector<8x256xf32>
    %84 = arith.mulf %82, %83 : vector<8x256xf32>
    %85 = vector.broadcast %12 : f32 to vector<8x256xf32>
    %86 = arith.mulf %85, %84 : vector<8x256xf32>
    %87 = arith.addf %36, %86 : vector<8x256xf32>
    %c1_i32_8 = arith.constant 1 : i32
    %88 = arith.cmpi eq, %20, %c1_i32_8 : i32
    %89 = arith.extui %88 : i1 to i32
    %c0_i32_9 = arith.constant 0 : i32
    %90 = arith.cmpi ne, %89, %c0_i32_9 : i32
    scf.if %90 {
      %c5_i32 = arith.constant 5 : i32
      %94 = arith.addi %3, %c5_i32 : i32
      %95 = arith.index_cast %94 : i32 to index
      %96 = memref.load %arg2[%95] : memref<64xf32, #tpu.memory_space<smem>>
      %97 = vector.broadcast %96 : f32 to vector<8x256xf32>
      %98 = arith.mulf %97, %87 : vector<8x256xf32>
      %c6_i32 = arith.constant 6 : i32
      %99 = arith.addi %3, %c6_i32 : i32
      %100 = arith.index_cast %99 : i32 to index
      %101 = memref.load %arg2[%100] : memref<64xf32, #tpu.memory_space<smem>>
      %102 = vector.extract_strided_slice %87 {offsets = [0, 0], sizes = [1, 256], strides = [1, 1]} : vector<8x256xf32> to vector<1x256xf32>
      %103 = vector.broadcast %22 : vector<8x1xf32> to vector<8x256xf32>
      %104 = vector.broadcast %102 : vector<1x256xf32> to vector<8x256xf32>
      %105 = arith.mulf %103, %104 : vector<8x256xf32>
      %106 = vector.extract_strided_slice %87 {offsets = [1, 0], sizes = [1, 256], strides = [1, 1]} : vector<8x256xf32> to vector<1x256xf32>
      %107 = vector.broadcast %23 : vector<8x1xf32> to vector<8x256xf32>
      %108 = vector.broadcast %106 : vector<1x256xf32> to vector<8x256xf32>
      %109 = arith.mulf %107, %108 : vector<8x256xf32>
      %110 = arith.addf %105, %109 : vector<8x256xf32>
      %111 = vector.extract_strided_slice %87 {offsets = [2, 0], sizes = [1, 256], strides = [1, 1]} : vector<8x256xf32> to vector<1x256xf32>
      %112 = vector.broadcast %24 : vector<8x1xf32> to vector<8x256xf32>
      %113 = vector.broadcast %111 : vector<1x256xf32> to vector<8x256xf32>
      %114 = arith.mulf %112, %113 : vector<8x256xf32>
      %115 = arith.addf %110, %114 : vector<8x256xf32>
      %116 = vector.extract_strided_slice %87 {offsets = [3, 0], sizes = [1, 256], strides = [1, 1]} : vector<8x256xf32> to vector<1x256xf32>
      %117 = vector.broadcast %25 : vector<8x1xf32> to vector<8x256xf32>
      %118 = vector.broadcast %116 : vector<1x256xf32> to vector<8x256xf32>
      %119 = arith.mulf %117, %118 : vector<8x256xf32>
      %120 = arith.addf %115, %119 : vector<8x256xf32>
      %121 = vector.extract_strided_slice %87 {offsets = [4, 0], sizes = [1, 256], strides = [1, 1]} : vector<8x256xf32> to vector<1x256xf32>
      %122 = vector.broadcast %26 : vector<8x1xf32> to vector<8x256xf32>
      %123 = vector.broadcast %121 : vector<1x256xf32> to vector<8x256xf32>
      %124 = arith.mulf %122, %123 : vector<8x256xf32>
      %125 = arith.addf %120, %124 : vector<8x256xf32>
      %126 = vector.extract_strided_slice %87 {offsets = [5, 0], sizes = [1, 256], strides = [1, 1]} : vector<8x256xf32> to vector<1x256xf32>
      %127 = vector.broadcast %27 : vector<8x1xf32> to vector<8x256xf32>
      %128 = vector.broadcast %126 : vector<1x256xf32> to vector<8x256xf32>
      %129 = arith.mulf %127, %128 : vector<8x256xf32>
      %130 = arith.addf %125, %129 : vector<8x256xf32>
      %131 = vector.extract_strided_slice %87 {offsets = [6, 0], sizes = [1, 256], strides = [1, 1]} : vector<8x256xf32> to vector<1x256xf32>
      %132 = vector.broadcast %28 : vector<8x1xf32> to vector<8x256xf32>
      %133 = vector.broadcast %131 : vector<1x256xf32> to vector<8x256xf32>
      %134 = arith.mulf %132, %133 : vector<8x256xf32>
      %135 = arith.addf %130, %134 : vector<8x256xf32>
      %136 = vector.extract_strided_slice %87 {offsets = [7, 0], sizes = [1, 256], strides = [1, 1]} : vector<8x256xf32> to vector<1x256xf32>
      %137 = vector.broadcast %29 : vector<8x1xf32> to vector<8x256xf32>
      %138 = vector.broadcast %136 : vector<1x256xf32> to vector<8x256xf32>
      %139 = arith.mulf %137, %138 : vector<8x256xf32>
      %140 = arith.addf %135, %139 : vector<8x256xf32>
      %141 = math.tanh %140 : vector<8x256xf32>
      %142 = vector.broadcast %101 : f32 to vector<8x256xf32>
      %143 = arith.mulf %142, %141 : vector<8x256xf32>
      %144 = arith.addf %98, %143 : vector<8x256xf32>
      %145 = arith.subf %87, %144 : vector<8x256xf32>
      %c7_i32 = arith.constant 7 : i32
      %146 = arith.addi %3, %c7_i32 : i32
      %147 = arith.index_cast %146 : i32 to index
      %148 = memref.load %arg2[%147] : memref<64xf32, #tpu.memory_space<smem>>
      %149 = vector.broadcast %148 : f32 to vector<8x256xf32>
      %150 = arith.mulf %145, %149 : vector<8x256xf32>
      %cst = arith.constant 5.000000e-01 : f32
      %151 = arith.mulf %cst, %12 : f32
      %152 = arith.addf %84, %150 : vector<8x256xf32>
      %153 = vector.broadcast %151 : f32 to vector<8x256xf32>
      %154 = arith.mulf %153, %152 : vector<8x256xf32>
      %155 = arith.addf %36, %154 : vector<8x256xf32>
      %c0_12 = arith.constant 0 : index
      %c0_13 = arith.constant 0 : index
      %156 = vector.load %arg7[%c0_12, %c0_13] : memref<8x256xf32, #tpu.memory_space<vmem>>, vector<8x256xf32>
      tpu.vector_store %arg7[%c0_12, %c0_13], %155 {strides = array<i32>} : memref<8x256xf32, #tpu.memory_space<vmem>>, vector<8x256xf32>,
    } else {
    }
    %c0_i32_10 = arith.constant 0 : i32
    %91 = arith.cmpi eq, %20, %c0_i32_10 : i32
    %92 = arith.extui %91 : i1 to i32
    %c0_i32_11 = arith.constant 0 : i32
    %93 = arith.cmpi ne, %92, %c0_i32_11 : i32
    scf.if %93 {
      %c0_12 = arith.constant 0 : index
      %c0_13 = arith.constant 0 : index
      %94 = vector.load %arg7[%c0_12, %c0_13] : memref<8x256xf32, #tpu.memory_space<vmem>>, vector<8x256xf32>
      tpu.vector_store %arg7[%c0_12, %c0_13], %87 {strides = array<i32>} : memref<8x256xf32, #tpu.memory_space<vmem>>, vector<8x256xf32>,
    } else {
    }
    return
  }
  func.func @transform_0(%arg0: i32, %arg1: i32, %arg2: memref<64xf32, #tpu.memory_space<smem>>, %arg3: memref<8xi32, #tpu.memory_space<smem>>) -> (i32, i32, i32) {
    %c0_i32 = arith.constant 0 : i32
    %c0_i32_0 = arith.constant 0 : i32
    return %arg1, %c0_i32, %arg0 : i32, i32, i32
  }
  func.func @transform_1(%arg0: i32, %arg1: i32, %arg2: memref<64xf32, #tpu.memory_space<smem>>, %arg3: memref<8xi32, #tpu.memory_space<smem>>) -> (i32, i32) {
    %c0_i32 = arith.constant 0 : i32
    %c0_i32_0 = arith.constant 0 : i32
    %c0_i32_1 = arith.constant 0 : i32
    return %c0_i32, %c0_i32_0 : i32, i32
  }
  func.func @transform_2(%arg0: i32, %arg1: i32, %arg2: memref<64xf32, #tpu.memory_space<smem>>, %arg3: memref<8xi32, #tpu.memory_space<smem>>) -> (i32, i32) {
    %c0_i32 = arith.constant 0 : i32
    %c0_i32_0 = arith.constant 0 : i32
    return %c0_i32, %arg0 : i32, i32
  }
  func.func @transform_3(%arg0: i32, %arg1: i32, %arg2: memref<64xf32, #tpu.memory_space<smem>>, %arg3: memref<8xi32, #tpu.memory_space<smem>>) -> (i32, i32) {
    %c0_i32 = arith.constant 0 : i32
    %c0_i32_0 = arith.constant 0 : i32
    return %c0_i32, %arg0 : i32, i32
  }
}

</mosaic_0001>

<llo_original>
// kernel: tpu_custom_call.1
$region0: #{tpu_custom_call.1}
  #allocation0 [shape = 'u32[]', space=smem, size = 0x4, offset = 0x4, fixed_abs, tag = 'smem constant byte address 0x4 - core index']
  #allocation1 [shape = 'u32[144,128]{1,0:T(1,128)}', space=vmem, size = 0x12000, scoped, tag = 'internal scratch']
  #allocation2 [shape = 's32[1]{0}', space=sflag, size = 0x4, scoped, tag = 'scoped memory for tpu_custom_call.1']
  #allocation3 [shape = 'u8[512]{0}', space=smem, size = 0x200, scoped, tag = 'prefetched SMEM operand 0']
  #allocation4 [shape = 'u8[512]{0}', space=smem, size = 0x200, scoped, tag = 'prefetched SMEM operand 1']
  %s0 = inlined_call_operand.hbm [shape: f32[64], index: 0, kind: input, shape index: {}]
  %s1 = inlined_call_operand.vmem [shape: s32[8], index: 1, kind: input, shape index: {}]
  %s2 = inlined_call_operand.hbm [shape: bf16[8,8,256], index: 2, kind: input, shape index: {}]
  %s3 = inlined_call_operand.vmem [shape: f32[8,8], index: 3, kind: input, shape index: {}]
  %s4 = inlined_call_operand.hbm [shape: f32[8,256], index: 4, kind: input, shape index: {}]
  %s5 = inlined_call_operand.hbm [shape: f32[8,256], index: 5, kind: output, shape index: {}]
  %s6 = sld [smem:[#allocation0]]
  $region65: #{tpu_custom_call.1} parent=0
    _
  %s8 = ssub.s32 1, %s6
  %s9 = scalar_select 0, %s8, %s6
  %11 = dma.hbm_to_smem %s0, 16, [#allocation3], [#allocation2]
  %s12 = sshll.u32 %s1, 4
  %s13 = int_to_ptr.vmem [resolvable:$true] %s12
  %15 = dma.vmem_to_smem %s13, 16, [#allocation4], [#allocation2]
  %16 = dma.done [#allocation2], 32
  %17 = sfence
  $region1: #{tpu_custom_call.1} parent=0
    #allocation5 [shape = 'u8[8192]{0}', space=vmem, size = 0x2000, scoped, tag = 'input window, operand 2']
    #allocation6 [shape = 's32[2]{0}', space=sflag, size = 0x8, scoped, tag = 'scoped memory for tpu_custom_call.1']
    #allocation7 [shape = 's32[2]{0}', space=sflag, size = 0x8, scoped, tag = 'scoped memory for tpu_custom_call.1']
    #allocation8 [shape = 'u8[8192]{0}', space=vmem, size = 0x2000, scoped, tag = 'input window, operand 4, single buffered']
    #allocation9 [shape = 's32[1]{0}', space=sflag, size = 0x4, scoped, tag = 'scoped memory for tpu_custom_call.1']
    #allocation10 [shape = 'u8[8192]{0}', space=vmem, size = 0x2000, scoped, tag = 'output window, operand 0, single buffered']
    %18 = vsyncpa [#allocation6], 0
    %s19 = scalar_lea.sflag [#allocation6], 1
    %20 = vsyncpa %s19, 0
    %21 = vsyncpa [#allocation9], 0
    %22 = vsyncpa [#allocation7], 0
    loop: start=0, step=1, limit=10
    $region2: #{tpu_custom_call.1} parent=1 // loop_pre_header
      _
    $region3: #{tpu_custom_call.1} parent=1 // loop_header
      %s24 = sphi 0, %s28
      %p25 = scmp.ge.s32.totalorder %s24, 10
      %s31 = sphi 0, %s43
      %s32 = sphi 0, %s39
      %s33 = sphi 0, %s31
      %s34 = sphi 0, %s32
      %s35 = sphi 0, %s33
      %s36 = sphi 0, %s34
      %s48 = sphi 0, %s50
      %s51 = sphi 0, %s48
      %s52 = sphi 0, %s51
      %s68 = sphi 0, %s52
      %s72 = sphi 0, %s72
      %s74 = sphi 0, %s72
      %s75 = sphi 0, %s74
      %s89 = sphi 0, %s75
      %s95 = sphi 0, %s97
      %s98 = sphi 0, %s95
      %s99 = sphi 0, %s98
      %s115 = sphi 0, %s99
      %s121 = sphi 0, %s123
      %s124 = sphi 0, %s121
      %s125 = sphi 0, %s124
      %s141 = sphi 0, %s125
    $region4: #{tpu_custom_call.1} parent=1 // loop_header_branch
      %27 = sbr.rel (%p25) target = $region8
    $region5: #{tpu_custom_call.1} parent=1 // loop_body
      %s29 = ssub.s32 %s24, 1
      %s30 = ssub.s32 %s24, 2
      %s37 = sadd.s32 1, %s32
      %p38 = scmp.ge.s32.totalorder %s37, 8
      %s39 = scalar_select %p38, 0, %s37
      %s40 = sadd.s32 1, %s31
      %s41 = scalar_select %p38, %s40, %s31
      %p42 = scmp.ge.s32.totalorder %s41, 1
      %s43 = scalar_select %p42, 0, %s41
      %s44 = ssub.s32 %s32, %s39
      %s45 = ssub.s32 %s31, %s43
      %s46 = sor.u32 %s44, %s45
      %p47 = scmp.eq.s32.totalorder %s46, 0
      %s49 = sadd.s32 %s48, 1
      %s50 = scalar_select %p47, %s48, %s49
      %p53 = pneg %p47
      %p54 = scmp.eq.s32.totalorder %s24, 7
      %p55 = por %p53, %p54
      %p56 = scmp.ne.s32.totalorder %s48, %s51
      %p57 = scmp.eq.s32.totalorder %s24, 0
      %p58 = por %p56, %p57
      %p59 = scmp.ne.s32.totalorder %s48, %s51
      %p60 = scmp.eq.s32.totalorder %s29, 7
      %p61 = por %p59, %p60
      %p62 = scmp.ne.s32.totalorder %s51, %s52
      %p63 = scmp.eq.s32.totalorder %s29, 0
      %p64 = por %p62, %p63
      %p65 = scmp.ne.s32.totalorder %s51, %s52
      %p66 = scmp.eq.s32.totalorder %s30, 7
      %p67 = por %p65, %p66
      %p69 = scmp.ne.s32.totalorder %s52, %s68
      %p70 = scmp.eq.s32.totalorder %s30, 0
      %p71 = por %p69, %p70
      %s73 = sadd.s32 %s72, 1
      %p76 = scmp.eq.s32.totalorder %s24, 7
      %p77 = scmp.ne.s32.totalorder %s72, %s74
      %p78 = scmp.eq.s32.totalorder %s24, 0
      %p79 = por %p77, %p78
      %p80 = scmp.ne.s32.totalorder %s72, %s74
      %p81 = scmp.eq.s32.totalorder %s29, 7
      %p82 = por %p80, %p81
      %p83 = scmp.ne.s32.totalorder %s74, %s75
      %p84 = scmp.eq.s32.totalorder %s29, 0
      %p85 = por %p83, %p84
      %p86 = scmp.ne.s32.totalorder %s74, %s75
      %p87 = scmp.eq.s32.totalorder %s30, 7
      %p88 = por %p86, %p87
      %p90 = scmp.ne.s32.totalorder %s75, %s89
      %p91 = scmp.eq.s32.totalorder %s30, 0
      %p92 = por %p90, %p91
      %s93 = ssub.s32 %s31, %s43
      %p94 = scmp.eq.s32.totalorder %s93, 0
      %s96 = sadd.s32 %s95, 1
      %s97 = scalar_select %p94, %s95, %s96
      %p100 = pneg %p94
      %p101 = scmp.eq.s32.totalorder %s24, 7
      %p102 = por %p100, %p101
      %p103 = scmp.ne.s32.totalorder %s95, %s98
      %p104 = scmp.eq.s32.totalorder %s24, 0
      %p105 = por %p103, %p104
      %p106 = scmp.ne.s32.totalorder %s95, %s98
      %p107 = scmp.eq.s32.totalorder %s29, 7
      %p108 = por %p106, %p107
      %p109 = scmp.ne.s32.totalorder %s98, %s99
      %p110 = scmp.eq.s32.totalorder %s29, 0
      %p111 = por %p109, %p110
      %p112 = scmp.ne.s32.totalorder %s98, %s99
      %p113 = scmp.eq.s32.totalorder %s30, 7
      %p114 = por %p112, %p113
      %p116 = scmp.ne.s32.totalorder %s99, %s115
      %p117 = scmp.eq.s32.totalorder %s30, 0
      %p118 = por %p116, %p117
      %s119 = ssub.s32 %s31, %s43
      %p120 = scmp.eq.s32.totalorder %s119, 0
      %s122 = sadd.s32 %s121, 1
      %s123 = scalar_select %p120, %s121, %s122
      %p126 = pneg %p120
      %p127 = scmp.eq.s32.totalorder %s24, 7
      %p128 = por %p126, %p127
      %p129 = scmp.ne.s32.totalorder %s121, %s124
      %p130 = scmp.eq.s32.totalorder %s24, 0
      %p131 = por %p129, %p130
      %p132 = scmp.ne.s32.totalorder %s121, %s124
      %p133 = scmp.eq.s32.totalorder %s29, 7
      %p134 = por %p132, %p133
      %p135 = scmp.ne.s32.totalorder %s124, %s125
      %p136 = scmp.eq.s32.totalorder %s29, 0
      %p137 = por %p135, %p136
      %p138 = scmp.ne.s32.totalorder %s124, %s125
      %p139 = scmp.eq.s32.totalorder %s30, 7
      %p140 = por %p138, %p139
      %p142 = scmp.ne.s32.totalorder %s125, %s141
      %p143 = scmp.eq.s32.totalorder %s30, 0
      %p144 = por %p142, %p143
      %p145 = scmp.le.s32.totalorder 1, %s24
      %p146 = scmp.lt.s32.totalorder %s24, 9
      %p147 = pnand %p145, %p146
      %p148 = pneg %p147
      // Predicated region
      $region9: #{tpu_custom_call.1} parent=5 // pred_check
        _
      $region10: #{tpu_custom_call.1} parent=5 // pred_check_branch
        %150 = sbr.rel (%p147) target = $region12
      $region11: #{tpu_custom_call.1} parent=5 // pred_region
        %s151 = ssub.s32 %s24, 1
        // Predicated region
        $region13: #{tpu_custom_call.1} parent=11 // pred_check
          %p152 = pneg %p85
        $region14: #{tpu_custom_call.1} parent=11 // pred_check_branch
          %154 = sbr.rel (%p152) target = $region16
        $region15: #{tpu_custom_call.1} parent=11 // pred_region
          _
        $region16: #{tpu_custom_call.1} parent=11 // pred_fallthru
          _
        // Predicated region
        $region17: #{tpu_custom_call.1} parent=11 // pred_check
          %p155 = pneg %p111
        $region18: #{tpu_custom_call.1} parent=11 // pred_check_branch
          %157 = sbr.rel (%p155) target = $region20
        $region19: #{tpu_custom_call.1} parent=11 // pred_region
          %s158 = smul.u32 2, %s33
          %s160 = ssub.s32 256, 256
          %161 = vsyncadd [#allocation9], %s160
          %s162 = smul.addr %s158, 128
          %s163 = scalar_lea.hbm %s4, %s162
          %s165 = sshll.u32 [#allocation8], 4
          %s166 = int_to_ptr.vmem [resolvable:$true] %s165
          %168 = dma.hbm_to_vmem [thread:$0]  %s163, 256, %s166, [#allocation9]
        $region20: #{tpu_custom_call.1} parent=11 // pred_fallthru
          _
      $region12: #{tpu_custom_call.1} parent=5 // pred_fallthru
        _
      %p169 = scmp.lt.s32.totalorder %s24, 8
      // Predicated region
      $region21: #{tpu_custom_call.1} parent=5 // pred_check
        %p170 = pneg %p169
      $region22: #{tpu_custom_call.1} parent=5 // pred_check_branch
        %172 = sbr.rel (%p170) target = $region24
      $region23: #{tpu_custom_call.1} parent=5 // pred_region
        // Predicated region
        $region25: #{tpu_custom_call.1} parent=23 // pred_check
          %p173 = pneg %p58
        $region26: #{tpu_custom_call.1} parent=23 // pred_check_branch
          %175 = sbr.rel (%p173) target = $region28
        $region27: #{tpu_custom_call.1} parent=23 // pred_region
          %s176 = sand.u32 %s48, 1
          %s177 = scalar_lea.sflag [#allocation6], %s176
          %s178 = sand.u32 %s48, 1
          %s179 = smul.addr %s178, 8
          %s180 = scalar_lea.vmem [#allocation5], %s179
          %s181 = smul.u32 2, %s31
          %s183 = ssub.s32 128, 128
          %184 = vsyncadd %s177, %s183
          %s185 = smul.addr %s32, 2
          %s186 = sadd.s32 %s181, %s185
          %s187 = smul.addr %s186, 64
          %s188 = scalar_lea.hbm %s2, %s187
          %s190 = sshll.u32 %s180, 4
          %s191 = int_to_ptr.vmem [resolvable:$true] %s190
          %193 = dma.hbm_to_vmem [thread:$0]  %s188, 128, %s191, %s177
        $region28: #{tpu_custom_call.1} parent=23 // pred_fallthru
          _
      $region24: #{tpu_custom_call.1} parent=5 // pred_fallthru
        _
      %p194 = scmp.le.s32.totalorder 1, %s24
      %p195 = scmp.lt.s32.totalorder %s24, 9
      %p196 = pnand %p194, %p195
      %p197 = pneg %p196
      // Predicated region
      $region29: #{tpu_custom_call.1} parent=5 // pred_check
        _
      $region30: #{tpu_custom_call.1} parent=5 // pred_check_branch
        %199 = sbr.rel (%p196) target = $region32
      $region31: #{tpu_custom_call.1} parent=5 // pred_region
        %s200 = ssub.s32 %s24, 1
        %s201 = sand.u32 %s51, 1
        %s202 = scalar_lea.sflag [#allocation6], %s201
        %s203 = sand.u32 %s51, 1
        %s204 = smul.addr %s203, 8
        %s205 = scalar_lea.vmem [#allocation5], %s204
        // Predicated region
        $region33: #{tpu_custom_call.1} parent=31 // pred_check
          %p206 = pneg %p64
        $region34: #{tpu_custom_call.1} parent=31 // pred_check_branch
          %208 = sbr.rel (%p206) target = $region36
        $region35: #{tpu_custom_call.1} parent=31 // pred_region
          %209 = dma.done %s202, 128
        $region36: #{tpu_custom_call.1} parent=31 // pred_fallthru
          _
        // Predicated region
        $region37: #{tpu_custom_call.1} parent=31 // pred_check
          %p210 = pneg %p111
        $region38: #{tpu_custom_call.1} parent=31 // pred_check_branch
          %212 = sbr.rel (%p210) target = $region40
        $region39: #{tpu_custom_call.1} parent=31 // pred_region
          %213 = dma.done [#allocation9], 256
        $region40: #{tpu_custom_call.1} parent=31 // pred_fallthru
          _
        %s214 = sand.u32 %s51, 1
        %s215 = scalar_lea.sflag [#allocation6], %s214
        %s216 = sand.u32 %s51, 1
        %s217 = smul.addr %s216, 8
        %s218 = scalar_lea.vmem [#allocation5], %s217
        %p219 = pneg %p64
        %p220 = pneg %p61
        %p221 = pneg %p85
        %p222 = pneg %p82
        %p223 = pneg %p111
        %p224 = pneg %p108
        %p225 = pneg %p137
        %p226 = pneg %p134
        %s227 = smul.u32 2, %s33
        %s228 = smul.u32 2, %s33
        %s229 = smul.u32 2, %s33
        %p230 = scmp.eq.s32.totalorder %s34, 0
        // Predicated region
        $region41: #{tpu_custom_call.1} parent=31 // pred_check
          %p231 = pneg %p230
        $region42: #{tpu_custom_call.1} parent=31 // pred_check_branch
          %233 = sbr.rel (%p231) target = $region44
        $region43: #{tpu_custom_call.1} parent=31 // pred_region
          %v234 = vld [vmem:[#allocation8] sm:$0xff]
          %v235 = vld [vmem:[#allocation8 + $0x8] sm:$0xff]
          %236 = vst [vmem:[#allocation10] sm:$0xff] %v234
          %237 = vst [vmem:[#allocation10 + $0x8] sm:$0xff] %v235
        $region44: #{tpu_custom_call.1} parent=31 // pred_fallthru
          _
        %s238 = smul.u32 %s34, 8
        %s239 = sld [smem:[#allocation3 + %s238]]
        %s240 = sadd.s32 %s238, 1
        %s241 = sld [smem:[#allocation3 + %s240]]
        %s242 = sadd.s32 %s238, 2
        %s243 = sld [smem:[#allocation3 + %s242]]
        %s244 = sadd.s32 %s238, 3
        %s245 = sld [smem:[#allocation3 + %s244]]
        %s246 = sadd.s32 %s238, 4
        %s247 = sld [smem:[#allocation3 + %s246]]
        %s248 = sld [smem:[#allocation4 + %s34]]
        %v249 = vld [vmem:[%s3] sm:$0xff]
        %v250 = vld [vmem:[#allocation10] sm:$0xff]
        %v251 = vld [vmem:[#allocation10 + $0x8] sm:$0xff]
        %v252 = vld [vmem:[%s205] sm:$0xff]
        %v253 = vunpack.c.l.bf16 %v252
        %v254 = vunpack.c.h.bf16 %v252
        %v255 = vstv %s239
        %v256 = vmul.f32 %v255, %v253
        %v257 = vmul.f32 %v255, %v254
        %v258 = vadd.f32 %v250, %v256
        %v259 = vadd.f32 %v251, %v257
        %v260 = vstv %s245
        %v261 = vmul.f32 %v260, %v258
        %v262 = vmul.f32 %v260, %v259
        %264 = vset.pattern.permute.xlu0 0
        %265 = vperm.xlu0 %264, %v249
        %v266 = vpop.permute.xlu0 %265
        %v268 = vlaneseq
        %v269 = vshrl.u32 %v268, 7
        %v270 = vsub.s32 0, %v269
        %v271 = vrot.slane %v258, %v270
        %v272 = vlaneseq
        %v273 = vshrl.u32 %v272, 7
        %v274 = vsub.s32 0, %v273
        %v275 = vrot.slane %v259, %v274
        %v276 = vmul.f32 %v266, %v271
        %v277 = vmul.f32 %v266, %v275
        %278 = vset.pattern.permute.xlu0 1
        %279 = vperm.xlu0 %278, %v249
        %v280 = vpop.permute.xlu0 %279
        %v282 = vlaneseq
        %v283 = vshrl.u32 %v282, 7
        %v284 = vsub.s32 1, %v283
        %v285 = vrot.slane %v258, %v284
        %v286 = vlaneseq
        %v287 = vshrl.u32 %v286, 7
        %v288 = vsub.s32 1, %v287
        %v289 = vrot.slane %v259, %v288
        %v290 = vmul.f32 %v280, %v285
        %v291 = vmul.f32 %v280, %v289
        %v292 = vadd.f32 %v276, %v290
        %v293 = vadd.f32 %v277, %v291
        %294 = vset.pattern.permute.xlu0 2
        %295 = vperm.xlu0 %294, %v249
        %v296 = vpop.permute.xlu0 %295
        %v298 = vlaneseq
        %v299 = vshrl.u32 %v298, 7
        %v300 = vsub.s32 2, %v299
        %v301 = vrot.slane %v258, %v300
        %v302 = vlaneseq
        %v303 = vshrl.u32 %v302, 7
        %v304 = vsub.s32 2, %v303
        %v305 = vrot.slane %v259, %v304
        %v306 = vmul.f32 %v296, %v301
        %v307 = vmul.f32 %v296, %v305
        %v308 = vadd.f32 %v292, %v306
        %v309 = vadd.f32 %v293, %v307
        %310 = vset.pattern.permute.xlu0 3
        %311 = vperm.xlu0 %310, %v249
        %v312 = vpop.permute.xlu0 %311
        %v314 = vlaneseq
        %v315 = vshrl.u32 %v314, 7
        %v316 = vsub.s32 3, %v315
        %v317 = vrot.slane %v258, %v316
        %v318 = vlaneseq
        %v319 = vshrl.u32 %v318, 7
        %v320 = vsub.s32 3, %v319
        %v321 = vrot.slane %v259, %v320
        %v322 = vmul.f32 %v312, %v317
        %v323 = vmul.f32 %v312, %v321
        %v324 = vadd.f32 %v308, %v322
        %v325 = vadd.f32 %v309, %v323
        %326 = vset.pattern.permute.xlu0 4
        %327 = vperm.xlu0 %326, %v249
        %v328 = vpop.permute.xlu0 %327
        %v330 = vlaneseq
        %v331 = vshrl.u32 %v330, 7
        %v332 = vsub.s32 4, %v331
        %v333 = vrot.slane %v258, %v332
        %v334 = vlaneseq
        %v335 = vshrl.u32 %v334, 7
        %v336 = vsub.s32 4, %v335
        %v337 = vrot.slane %v259, %v336
        %v338 = vmul.f32 %v328, %v333
        %v339 = vmul.f32 %v328, %v337
        %v340 = vadd.f32 %v324, %v338
        %v341 = vadd.f32 %v325, %v339
        %342 = vset.pattern.permute.xlu0 5
        %343 = vperm.xlu0 %342, %v249
        %v344 = vpop.permute.xlu0 %343
        %v346 = vlaneseq
        %v347 = vshrl.u32 %v346, 7
        %v348 = vsub.s32 5, %v347
        %v349 = vrot.slane %v258, %v348
        %v350 = vlaneseq
        %v351 = vshrl.u32 %v350, 7
        %v352 = vsub.s32 5, %v351
        %v353 = vrot.slane %v259, %v352
        %v354 = vmul.f32 %v344, %v349
        %v355 = vmul.f32 %v344, %v353
        %v356 = vadd.f32 %v340, %v354
        %v357 = vadd.f32 %v341, %v355
        %358 = vset.pattern.permute.xlu0 6
        %359 = vperm.xlu0 %358, %v249
        %v360 = vpop.permute.xlu0 %359
        %v362 = vlaneseq
        %v363 = vshrl.u32 %v362, 7
        %v364 = vsub.s32 6, %v363
        %v365 = vrot.slane %v258, %v364
        %v366 = vlaneseq
        %v367 = vshrl.u32 %v366, 7
        %v368 = vsub.s32 6, %v367
        %v369 = vrot.slane %v259, %v368
        %v370 = vmul.f32 %v360, %v365
        %v371 = vmul.f32 %v360, %v369
        %v372 = vadd.f32 %v356, %v370
        %v373 = vadd.f32 %v357, %v371
        %374 = vset.pattern.permute.xlu0 7
        %375 = vperm.xlu0 %374, %v249
        %v376 = vpop.permute.xlu0 %375
        %v378 = vlaneseq
        %v379 = vshrl.u32 %v378, 7
        %v380 = vsub.s32 7, %v379
        %v381 = vrot.slane %v258, %v380
        %v382 = vlaneseq
        %v383 = vshrl.u32 %v382, 7
        %v384 = vsub.s32 7, %v383
        %v385 = vrot.slane %v259, %v384
        %v386 = vmul.f32 %v376, %v381
        %v387 = vmul.f32 %v376, %v385
        %v388 = vadd.f32 %v372, %v386
        %v389 = vadd.f32 %v373, %v387
        %v390 = vtanh.pop %v388
        %v391 = vtanh.pop %v389
        %v392 = vstv %s247
        %v393 = vmul.f32 %v392, %v390
        %v394 = vmul.f32 %v392, %v391
        %v395 = vadd.f32 %v261, %v393
        %v396 = vadd.f32 %v262, %v394
        %v397 = vsub.f32 %v258, %v395
        %v398 = vsub.f32 %v259, %v396
        %v399 = vstv %s241
        %v400 = vmul.f32 %v397, %v399
        %v401 = vmul.f32 %v398, %v399
        %v402 = vstv %s243
        %v403 = vmul.f32 %v402, %v400
        %v404 = vmul.f32 %v402, %v401
        %v405 = vadd.f32 %v258, %v403
        %v406 = vadd.f32 %v259, %v404
        %p407 = scmp.eq.s32.totalorder %s248, 1
        // Predicated region
        $region45: #{tpu_custom_call.1} parent=31 // pred_check
          %p408 = pneg %p407
        $region46: #{tpu_custom_call.1} parent=31 // pred_check_branch
          %410 = sbr.rel (%p408) target = $region48
        $region47: #{tpu_custom_call.1} parent=31 // pred_region
          %s411 = sadd.s32 %s238, 5
          %s412 = sld [smem:[#allocation3 + %s411]]
          %v413 = vstv %s412
          %v414 = vmul.f32 %v413, %v405
          %v415 = vmul.f32 %v413, %v406
          %s416 = sadd.s32 %s238, 6
          %s417 = sld [smem:[#allocation3 + %s416]]
          %v418 = vlaneseq
          %v419 = vshrl.u32 %v418, 7
          %v420 = vsub.s32 0, %v419
          %v421 = vrot.slane %v405, %v420
          %v422 = vlaneseq
          %v423 = vshrl.u32 %v422, 7
          %v424 = vsub.s32 0, %v423
          %v425 = vrot.slane %v406, %v424
          %v426 = vmul.f32 %v266, %v421
          %v427 = vmul.f32 %v266, %v425
          %v428 = vlaneseq
          %v429 = vshrl.u32 %v428, 7
          %v430 = vsub.s32 1, %v429
          %v431 = vrot.slane %v405, %v430
          %v432 = vlaneseq
          %v433 = vshrl.u32 %v432, 7
          %v434 = vsub.s32 1, %v433
          %v435 = vrot.slane %v406, %v434
          %v436 = vmul.f32 %v280, %v431
          %v437 = vmul.f32 %v280, %v435
          %v438 = vadd.f32 %v426, %v436
          %v439 = vadd.f32 %v427, %v437
          %v440 = vlaneseq
          %v441 = vshrl.u32 %v440, 7
          %v442 = vsub.s32 2, %v441
          %v443 = vrot.slane %v405, %v442
          %v444 = vlaneseq
          %v445 = vshrl.u32 %v444, 7
          %v446 = vsub.s32 2, %v445
          %v447 = vrot.slane %v406, %v446
          %v448 = vmul.f32 %v296, %v443
          %v449 = vmul.f32 %v296, %v447
          %v450 = vadd.f32 %v438, %v448
          %v451 = vadd.f32 %v439, %v449
          %v452 = vlaneseq
          %v453 = vshrl.u32 %v452, 7
          %v454 = vsub.s32 3, %v453
          %v455 = vrot.slane %v405, %v454
          %v456 = vlaneseq
          %v457 = vshrl.u32 %v456, 7
          %v458 = vsub.s32 3, %v457
          %v459 = vrot.slane %v406, %v458
          %v460 = vmul.f32 %v312, %v455
          %v461 = vmul.f32 %v312, %v459
          %v462 = vadd.f32 %v450, %v460
          %v463 = vadd.f32 %v451, %v461
          %v464 = vlaneseq
          %v465 = vshrl.u32 %v464, 7
          %v466 = vsub.s32 4, %v465
          %v467 = vrot.slane %v405, %v466
          %v468 = vlaneseq
          %v469 = vshrl.u32 %v468, 7
          %v470 = vsub.s32 4, %v469
          %v471 = vrot.slane %v406, %v470
          %v472 = vmul.f32 %v328, %v467
          %v473 = vmul.f32 %v328, %v471
          %v474 = vadd.f32 %v462, %v472
          %v475 = vadd.f32 %v463, %v473
          %v476 = vlaneseq
          %v477 = vshrl.u32 %v476, 7
          %v478 = vsub.s32 5, %v477
          %v479 = vrot.slane %v405, %v478
          %v480 = vlaneseq
          %v481 = vshrl.u32 %v480, 7
          %v482 = vsub.s32 5, %v481
          %v483 = vrot.slane %v406, %v482
          %v484 = vmul.f32 %v344, %v479
          %v485 = vmul.f32 %v344, %v483
          %v486 = vadd.f32 %v474, %v484
          %v487 = vadd.f32 %v475, %v485
          %v488 = vlaneseq
          %v489 = vshrl.u32 %v488, 7
          %v490 = vsub.s32 6, %v489
          %v491 = vrot.slane %v405, %v490
          %v492 = vlaneseq
          %v493 = vshrl.u32 %v492, 7
          %v494 = vsub.s32 6, %v493
          %v495 = vrot.slane %v406, %v494
          %v496 = vmul.f32 %v360, %v491
          %v497 = vmul.f32 %v360, %v495
          %v498 = vadd.f32 %v486, %v496
          %v499 = vadd.f32 %v487, %v497
          %v500 = vlaneseq
          %v501 = vshrl.u32 %v500, 7
          %v502 = vsub.s32 7, %v501
          %v503 = vrot.slane %v405, %v502
          %v504 = vlaneseq
          %v505 = vshrl.u32 %v504, 7
          %v506 = vsub.s32 7, %v505
          %v507 = vrot.slane %v406, %v506
          %v508 = vmul.f32 %v376, %v503
          %v509 = vmul.f32 %v376, %v507
          %v510 = vadd.f32 %v498, %v508
          %v511 = vadd.f32 %v499, %v509
          %v512 = vtanh.pop %v510
          %v513 = vtanh.pop %v511
          %v514 = vstv %s417
          %v515 = vmul.f32 %v514, %v512
          %v516 = vmul.f32 %v514, %v513
          %v517 = vadd.f32 %v414, %v515
          %v518 = vadd.f32 %v415, %v516
          %v519 = vsub.f32 %v405, %v517
          %v520 = vsub.f32 %v406, %v518
          %s521 = sadd.s32 %s238, 7
          %s522 = sld [smem:[#allocation3 + %s521]]
          %v523 = vstv %s522
          %v524 = vmul.f32 %v519, %v523
          %v525 = vmul.f32 %v520, %v523
          %s526 = smul.f32 %s243, 0.5
          %v527 = vadd.f32 %v400, %v524
          %v528 = vadd.f32 %v401, %v525
          %v529 = vstv %s526
          %v530 = vmul.f32 %v529, %v527
          %v531 = vmul.f32 %v529, %v528
          %v532 = vadd.f32 %v258, %v530
          %v533 = vadd.f32 %v259, %v531
          %534 = vst [vmem:[#allocation10] sm:$0xff] %v532
          %535 = vst [vmem:[#allocation10 + $0x8] sm:$0xff] %v533
        $region48: #{tpu_custom_call.1} parent=31 // pred_fallthru
          _
        %p536 = scmp.eq.s32.totalorder %s248, 0
        // Predicated region
        $region49: #{tpu_custom_call.1} parent=31 // pred_check
          %p537 = pneg %p536
        $region50: #{tpu_custom_call.1} parent=31 // pred_check_branch
          %539 = sbr.rel (%p537) target = $region52
        $region51: #{tpu_custom_call.1} parent=31 // pred_region
          %540 = vst [vmem:[#allocation10] sm:$0xff] %v405
          %541 = vst [vmem:[#allocation10 + $0x8] sm:$0xff] %v406
        $region52: #{tpu_custom_call.1} parent=31 // pred_fallthru
          _
        // Predicated region
        $region53: #{tpu_custom_call.1} parent=31 // pred_check
          %p542 = pneg %p134
        $region54: #{tpu_custom_call.1} parent=31 // pred_check_branch
          %544 = sbr.rel (%p542) target = $region56
        $region55: #{tpu_custom_call.1} parent=31 // pred_region
          %s545 = smul.u32 2, %s33
          %s547 = ssub.s32 256, 256
          %548 = vsyncadd [#allocation7], %s547
          %s549 = smul.addr %s545, 128
          %s550 = scalar_lea.hbm %s5, %s549
          %s552 = sshll.u32 [#allocation10], 4
          %s553 = int_to_ptr.vmem [resolvable:$true] %s552
          %555 = dma.vmem_to_hbm [thread:$0]  %s553, 256, %s550, [#allocation7]
        $region56: #{tpu_custom_call.1} parent=31 // pred_fallthru
          _
        // Predicated region
        $region57: #{tpu_custom_call.1} parent=31 // pred_check
          %p556 = pneg %p134
        $region58: #{tpu_custom_call.1} parent=31 // pred_check_branch
          %558 = sbr.rel (%p556) target = $region60
        $region59: #{tpu_custom_call.1} parent=31 // pred_region
          %559 = dma.done [#allocation7], 256
        $region60: #{tpu_custom_call.1} parent=31 // pred_fallthru
          _
      $region32: #{tpu_custom_call.1} parent=5 // pred_fallthru
        _
      %p560 = scmp.le.s32.totalorder 2, %s24
      // Predicated region
      $region61: #{tpu_custom_call.1} parent=5 // pred_check
        %p561 = pneg %p560
      $region62: #{tpu_custom_call.1} parent=5 // pred_check_branch
        %563 = sbr.rel (%p561) target = $region64
      $region63: #{tpu_custom_call.1} parent=5 // pred_region
        %s564 = ssub.s32 %s24, 2
      $region64: #{tpu_custom_call.1} parent=5 // pred_fallthru
        _
    $region6: #{tpu_custom_call.1} parent=1 // loop_footer
      %s28 = sadd.s32 1, %s24
    $region7: #{tpu_custom_call.1} parent=1 // loop_footer_branch
      %23 = sbr.rel target = $region3
    $region8: #{tpu_custom_call.1} parent=1 // loop_exit
      _
    %565 = vsyncpa [#allocation6], 1
    %s566 = scalar_lea.sflag [#allocation6], 1
    %567 = vsyncpa %s566, 1
    %568 = vsyncpa [#allocation9], 1
    %569 = vsyncpa [#allocation7], 1
    %s570 = scalar_lea.sflag [#allocation7], 1
    %571 = vsyncpa %s570, 1

</llo_original>
